<compile_context>
chip_gen: v7x
topology: tpu7x:2x2x1
jax: 0.10.0
libtpu: 0.0.40
codegen_flags: <defaults>
</compile_context>

<pallas_src>
import jax
import jax.numpy as jnp
from jax import lax
from jax.experimental import pallas as pl
from jax.experimental.pallas import tpu as pltpu


def mlp_kernel(x_ref, w1_ref, b1_ref, w2_ref, b2_ref, o_ref):
    # x_ref:  (TB, in_dim)        w1_ref: (hidden, in_dim)   b1_ref: (1, hidden)
    # w2_ref: (out_dim, hidden)   b2_ref: (1, out_dim)       o_ref:  (TB, out_dim)
    #
    # First layer: x @ W1^T, expressed as a dot_general contracting dim 1 of
    # both operands so the MXU consumes the transposed weight directly (no
    # in-kernel or wrapper transpose of x).  f32 accumulation on the MXU.
    h = lax.dot_general(
        x_ref[...], w1_ref[...],
        dimension_numbers=(((1,), (1,)), ((), ())),
        preferred_element_type=jnp.float32,
    )                                              # (TB, hidden), f32
    h = jnp.maximum(h + b1_ref[...], 0.0)          # bias bcast over sublanes; VPU relu
    h = h.astype(w2_ref.dtype)                     # back to bf16 for the MXU

    # Second layer: h @ W2^T, same contraction trick.
    y = lax.dot_general(
        h, w2_ref[...],
        dimension_numbers=(((1,), (1,)), ((), ())),
        preferred_element_type=jnp.float32,
    )                                              # (TB, out_dim), f32
    y = y + b2_ref[...]

    # sigmoid = 1 / (1 + exp(-y)): exp on the EUP; approximate EUP reciprocal
    # (vrcp) instead of a VPU divide.  exp(-y) -> +inf for very negative y
    # gives 1/inf -> 0, the correct sigmoid limit.
    sig = pl.reciprocal(1.0 + jnp.exp(-y), approx=True)
    o_ref[...] = sig.astype(o_ref.dtype)


def _num_tensorcores():
    # Heuristic generation detection; only used to shape the grid.  v5e/v6e
    # have 1 TensorCore per chip, v7x has 2 (megacore-sharded "parallel" axes).
    try:
        kind = jax.devices()[0].device_kind.lower()
    except Exception:
        return 1
    return 2 if "v7" in kind else 1


def _pick_tile_b(batch, num_cores):
    # Lane-count of one batch tile.  Bigger tiles amortize the ~0.35us per
    # grid step; VMEM is nowhere near binding at these feature sizes.
    candidates = (2048, 1024, 512, 256, 128)
    if num_cores <= 1:
        # Single TensorCore: fewest steps wins; largest tile covering the batch.
        for t in candidates:
            if batch >= t:
                return t
        return 128
    # Multi-TensorCore (v7x): want >=2 grid steps, preferably an even count so
    # neither core idles on the last wavefront of the "parallel" batch axis.
    for t in candidates:
        steps = pl.cdiv(batch, t)
        if steps >= 2 and steps % 2 == 0:
            return t
    for t in candidates:
        if pl.cdiv(batch, t) >= 2:
            return t
    return 128


def _vmem_limit_bytes(tile_b, in_dim, hidden_dim, out_dim, act_bytes, wgt_bytes):
    # Double-buffered x / out tiles + resident weights + f32 hidden intermediate.
    act = 2 * 2 * tile_b * (in_dim + out_dim) * act_bytes
    wgt = (hidden_dim * in_dim + out_dim * hidden_dim) * wgt_bytes \
        + (hidden_dim + out_dim) * 4
    inter = tile_b * hidden_dim * 4
    need = 2 * (act + wgt + inter)                # 2x headroom
    floor = 8 * 1024 * 1024                       # few-MiB floor, tiny vs 64 MiB (v7x)
    return int(min(64 * 1024 * 1024, max(floor, need)))


def image_net_forward(x, w1, b1, w2, b2, *, tile_b=None):
    """Fused forward pass: sigmoid(relu(x @ W1^T + b1) @ W2^T + b2).

    x:  (B, in_dim)                          activations (bf16 recommended)
    w1: (hidden, in_dim),  b1: (hidden,)     PyTorch nn.Linear layout
    w2: (out_dim, hidden), b2: (out_dim,)
    returns (B, out_dim) in x.dtype
    """
    B, in_dim = x.shape
    hidden_dim = w1.shape[0]
    out_dim = w2.shape[0]
    assert w1.shape == (hidden_dim, in_dim)
    assert w2.shape == (out_dim, hidden_dim)

    if tile_b is None:
        tile_b = _pick_tile_b(B, _num_tensorcores())

    # Natural layout: batch on the sublane axis, features on lanes.  The only
    # wrapper-side data movement is a row-pad when B is not a tile multiple.
    bp = pl.cdiv(B, tile_b) * tile_b
    xb = x if bp == B else jnp.pad(x, ((0, bp - B), (0, 0)))

    b1r = b1.reshape(1, hidden_dim)
    b2r = b2.reshape(1, out_dim)

    grid = (bp // tile_b,)

    out = pl.pallas_call(
        mlp_kernel,
        out_shape=jax.ShapeDtypeStruct((bp, out_dim), x.dtype),
        grid_spec=pltpu.PrefetchScalarGridSpec(
            num_scalar_prefetch=0,
            grid=grid,
            in_specs=[
                pl.BlockSpec((tile_b, in_dim), lambda i: (i, 0)),       # x tile (contiguous)
                pl.BlockSpec((hidden_dim, in_dim), lambda i: (0, 0)),   # W1 (resident)
                pl.BlockSpec((1, hidden_dim), lambda i: (0, 0)),        # b1
                pl.BlockSpec((out_dim, hidden_dim), lambda i: (0, 0)),  # W2 (resident)
                pl.BlockSpec((1, out_dim), lambda i: (0, 0)),           # b2
            ],
            out_specs=pl.BlockSpec((tile_b, out_dim), lambda i: (i, 0)),
        ),
        compiler_params=pltpu.CompilerParams(
            dimension_semantics=("parallel",),
            vmem_limit_bytes=_vmem_limit_bytes(
                tile_b, in_dim, hidden_dim, out_dim,
                act_bytes=x.dtype.itemsize, wgt_bytes=w1.dtype.itemsize),
        ),
    )(xb, w1, b1r, w2, b2r)

    # TODO(synk): for real ImageNet-sized in_dim (e.g. 3*224*224), add a K grid
    # axis marked "arbitrary" (last), an f32 VMEM accumulator with pl.when
    # init/finalize, and size the W1 K-tiles so two double-buffered
    # (tile_k x hidden) bf16 blocks fit v7x's 64 MiB VMEM; at these toy shapes
    # the fully-resident single-pass form is optimal.

    return out if bp == B else out[:B]


def reference_forward(x, w1, b1, w2, b2):
    # f32 reference of the PyTorch module semantics.
    xf, w1f, b1f, w2f, b2f = (a.astype(jnp.float32) for a in (x, w1, b1, w2, b2))
    h = jnp.maximum(xf @ w1f.T + b1f, 0.0)
    return jax.nn.sigmoid(h @ w2f.T + b2f)


if __name__ == "__main__":
    # Small shapes consistent with the module: in=32, hidden=64, out=16, B=256.
    # On single-TC chips (v5e/v6e) this runs as a single 256-lane-batch tile
    # (grid=(1,)); on v7x it splits into two 128-row tiles across the two TCs.
    B, IN_DIM, HIDDEN_DIM, OUT_DIM = 256, 32, 64, 16

    key = jax.random.PRNGKey(0)
    kx, kw1, kb1, kw2, kb2 = jax.random.split(key, 5)

    # PyTorch-Linear-like init; activations/weights bf16 (halves HBM traffic of
    # this memory-bound kernel), tiny biases kept f32 (added post-MXU in f32).
    x = jax.random.normal(kx, (B, IN_DIM), dtype=jnp.float32).astype(jnp.bfloat16)
    lim1 = 1.0 / float(IN_DIM) ** 0.5
    w1 = jax.random.uniform(kw1, (HIDDEN_DIM, IN_DIM), jnp.float32, -lim1, lim1).astype(jnp.bfloat16)
    b1 = jax.random.uniform(kb1, (HIDDEN_DIM,), jnp.float32, -lim1, lim1)
    lim2 = 1.0 / float(HIDDEN_DIM) ** 0.5
    w2 = jax.random.uniform(kw2, (OUT_DIM, HIDDEN_DIM), jnp.float32, -lim2, lim2).astype(jnp.bfloat16)
    b2 = jax.random.uniform(kb2, (OUT_DIM,), jnp.float32, -lim2, lim2)

    out = image_net_forward(x, w1, b1, w2, b2)
    out = jax.block_until_ready(out)

    ref = reference_forward(x, w1, b1, w2, b2)
    assert out.shape == (B, OUT_DIM)
    err = float(jnp.max(jnp.abs(out.astype(jnp.float32) - ref)))
    assert err < 2e-2, f"mismatch vs reference: max abs err {err}"

    print("KERNEL_OK")
</pallas_src>

<mosaic_0001>
module attributes {stable_mosaic.version = 11 : i64} {
  func.func @mlp_kernel(%arg0: i32, %arg1: memref<256x32xbf16, #tpu.memory_space<vmem>>, %arg2: memref<64x32xbf16, #tpu.memory_space<vmem>>, %arg3: memref<1x64xf32, #tpu.memory_space<vmem>>, %arg4: memref<16x64xbf16, #tpu.memory_space<vmem>>, %arg5: memref<1x16xf32, #tpu.memory_space<vmem>>, %arg6: memref<256x16xbf16, #tpu.memory_space<vmem>>) attributes {dimension_semantics = [#tpu.dimension_semantics<parallel>], iteration_bounds = array<i64: 1>, scalar_prefetch = 0 : i64, scratch_operands = 0 : i64, tpu.core_type = #tpu.core_type<tc>, window_params = [{transform_indices = @transform_0, window_bounds = array<i64: 256, 32>}, {pipeline_mode = #tpu.pipeline_mode<synchronous>, transform_indices = @transform_1, window_bounds = array<i64: 64, 32>}, {pipeline_mode = #tpu.pipeline_mode<synchronous>, transform_indices = @transform_2, window_bounds = array<i64: 1, 64>}, {pipeline_mode = #tpu.pipeline_mode<synchronous>, transform_indices = @transform_3, window_bounds = array<i64: 16, 64>}, {pipeline_mode = #tpu.pipeline_mode<synchronous>, transform_indices = @transform_4, window_bounds = array<i64: 1, 16>}, {transform_indices = @transform_5, window_bounds = array<i64: 256, 16>}]} {
    %c0 = arith.constant 0 : index
    %c0_0 = arith.constant 0 : index
    %0 = vector.load %arg1[%c0, %c0_0] : memref<256x32xbf16, #tpu.memory_space<vmem>>, vector<256x32xbf16>
    %c0_1 = arith.constant 0 : index
    %c0_2 = arith.constant 0 : index
    %1 = vector.load %arg2[%c0_1, %c0_2] : memref<64x32xbf16, #tpu.memory_space<vmem>>, vector<64x32xbf16>
    %cst = arith.constant dense<0.000000e+00> : vector<256x64xf32>
    %2 = tpu.matmul %0, %1, %cst {dimension_numbers = #tpu.dot_dimension_numbers<[1], [1], [0], [0], [0, 0, 1, 0], [], []>} : vector<256x32xbf16>, vector<64x32xbf16>, vector<256x64xf32> -> vector<256x64xf32>
    %c0_3 = arith.constant 0 : index
    %c0_4 = arith.constant 0 : index
    %3 = vector.load %arg3[%c0_3, %c0_4] : memref<1x64xf32, #tpu.memory_space<vmem>>, vector<1x64xf32>
    %4 = vector.broadcast %3 : vector<1x64xf32> to vector<256x64xf32>
    %5 = arith.addf %2, %4 : vector<256x64xf32>
    %cst_5 = arith.constant 0.000000e+00 : f32
    %6 = vector.broadcast %cst_5 : f32 to vector<256x64xf32>
    %7 = arith.maximumf %5, %6 : vector<256x64xf32>
    %8 = arith.truncf %7 : vector<256x64xf32> to vector<256x64xbf16>
    %c0_6 = arith.constant 0 : index
    %c0_7 = arith.constant 0 : index
    %9 = vector.load %arg4[%c0_6, %c0_7] : memref<16x64xbf16, #tpu.memory_space<vmem>>, vector<16x64xbf16>
    %cst_8 = arith.constant dense<0.000000e+00> : vector<256x16xf32>
    %10 = tpu.matmul %8, %9, %cst_8 {dimension_numbers = #tpu.dot_dimension_numbers<[1], [1], [0], [0], [0, 0, 1, 0], [], []>} : vector<256x64xbf16>, vector<16x64xbf16>, vector<256x16xf32> -> vector<256x16xf32>
    %c0_9 = arith.constant 0 : index
    %c0_10 = arith.constant 0 : index
    %11 = vector.load %arg5[%c0_9, %c0_10] : memref<1x16xf32, #tpu.memory_space<vmem>>, vector<1x16xf32>
    %12 = vector.broadcast %11 : vector<1x16xf32> to vector<256x16xf32>
    %13 = arith.addf %10, %12 : vector<256x16xf32>
    %cst_11 = arith.constant 0.000000e+00 : f32
    %14 = vector.broadcast %cst_11 : f32 to vector<256x16xf32>
    %15 = arith.subf %14, %13 : vector<256x16xf32>
    %16 = math.exp %15 : vector<256x16xf32>
    %cst_12 = arith.constant 1.000000e+00 : f32
    %17 = vector.broadcast %cst_12 : f32 to vector<256x16xf32>
    %18 = arith.addf %17, %16 : vector<256x16xf32>
    %19 = tpu.reciprocal %18 {approx = true} : vector<256x16xf32> -> vector<256x16xf32>
    %20 = arith.truncf %19 : vector<256x16xf32> to vector<256x16xbf16>
    %c0_13 = arith.constant 0 : index
    %c0_14 = arith.constant 0 : index
    %21 = vector.load %arg6[%c0_13, %c0_14] : memref<256x16xbf16, #tpu.memory_space<vmem>>, vector<256x16xbf16>
    tpu.vector_store %arg6[%c0_13, %c0_14], %20 {strides = array<i32>} : memref<256x16xbf16, #tpu.memory_space<vmem>>, vector<256x16xbf16>,
    return
  }
  func.func @transform_0(%arg0: i32) -> (i32, i32) {
    %c0_i32 = arith.constant 0 : i32
    %c0_i32_0 = arith.constant 0 : i32
    return %arg0, %c0_i32 : i32, i32
  }
  func.func @transform_1(%arg0: i32) -> (i32, i32) {
    %c0_i32 = arith.constant 0 : i32
    %c0_i32_0 = arith.constant 0 : i32
    %c0_i32_1 = arith.constant 0 : i32
    return %c0_i32, %c0_i32_0 : i32, i32
  }
  func.func @transform_2(%arg0: i32) -> (i32, i32) {
    %c0_i32 = arith.constant 0 : i32
    %c0_i32_0 = arith.constant 0 : i32
    %c0_i32_1 = arith.constant 0 : i32
    return %c0_i32, %c0_i32_0 : i32, i32
  }
  func.func @transform_3(%arg0: i32) -> (i32, i32) {
    %c0_i32 = arith.constant 0 : i32
    %c0_i32_0 = arith.constant 0 : i32
    %c0_i32_1 = arith.constant 0 : i32
    return %c0_i32, %c0_i32_0 : i32, i32
  }
  func.func @transform_4(%arg0: i32) -> (i32, i32) {
    %c0_i32 = arith.constant 0 : i32
    %c0_i32_0 = arith.constant 0 : i32
    %c0_i32_1 = arith.constant 0 : i32
    return %c0_i32, %c0_i32_0 : i32, i32
  }
  func.func @transform_5(%arg0: i32) -> (i32, i32) {
    %c0_i32 = arith.constant 0 : i32
    %c0_i32_0 = arith.constant 0 : i32
    return %arg0, %c0_i32 : i32, i32
  }
}

</mosaic_0001>

<llo_original>
// kernel: tpu_custom_call.1
$region0: #{tpu_custom_call.1}
  #allocation0 [shape = 'u32[]', space=smem, size = 0x4, offset = 0x4, fixed_abs, tag = 'smem constant byte address 0x4 - core index']
  #allocation1 [shape = 'u32[144,128]{1,0:T(1,128)}', space=vmem, size = 0x12000, scoped, tag = 'internal scratch']
  %s0 = inlined_call_operand.vmem [shape: bf16[256,32], index: 0, kind: input, shape index: {}]
  %s1 = inlined_call_operand.vmem [shape: bf16[64,32], index: 1, kind: input, shape index: {}]
  %s2 = inlined_call_operand.vmem [shape: f32[1,64], index: 2, kind: input, shape index: {}]
  %s3 = inlined_call_operand.vmem [shape: bf16[16,64], index: 3, kind: input, shape index: {}]
  %s4 = inlined_call_operand.vmem [shape: f32[1,16], index: 4, kind: input, shape index: {}]
  %s5 = inlined_call_operand.vmem [shape: bf16[256,16], index: 5, kind: output, shape index: {}]
  %s6 = sld [smem:[#allocation0]]
  $region30: #{tpu_custom_call.1} parent=0
    _
  %s8 = ssub.s32 1, %s6
  %s9 = scalar_select 0, %s8, %s6
  // Predicated region
  $region2: #{tpu_custom_call.1} parent=0 // pred_check
    _
  $region3: #{tpu_custom_call.1} parent=0 // pred_check_branch
    %11 = sbr.rel (0) target = $region5
  $region4: #{tpu_custom_call.1} parent=0 // pred_region
    _
  $region5: #{tpu_custom_call.1} parent=0 // pred_fallthru
    _
  // Predicated region
  $region6: #{tpu_custom_call.1} parent=0 // pred_check
    _
  $region7: #{tpu_custom_call.1} parent=0 // pred_check_branch
    %13 = sbr.rel (0) target = $region9
  $region8: #{tpu_custom_call.1} parent=0 // pred_region
    _
  $region9: #{tpu_custom_call.1} parent=0 // pred_fallthru
    _
  // Predicated region
  $region10: #{tpu_custom_call.1} parent=0 // pred_check
    _
  $region11: #{tpu_custom_call.1} parent=0 // pred_check_branch
    %15 = sbr.rel (0) target = $region13
  $region12: #{tpu_custom_call.1} parent=0 // pred_region
    _
  $region13: #{tpu_custom_call.1} parent=0 // pred_fallthru
    _
  // Predicated region
  $region14: #{tpu_custom_call.1} parent=0 // pred_check
    _
  $region15: #{tpu_custom_call.1} parent=0 // pred_check_branch
    %17 = sbr.rel (0) target = $region17
  $region16: #{tpu_custom_call.1} parent=0 // pred_region
    _
  $region17: #{tpu_custom_call.1} parent=0 // pred_fallthru
    _
  // Predicated region
  $region18: #{tpu_custom_call.1} parent=0 // pred_check
    _
  $region19: #{tpu_custom_call.1} parent=0 // pred_check_branch
    %19 = sbr.rel (0) target = $region21
  $region20: #{tpu_custom_call.1} parent=0 // pred_region
    _
  $region21: #{tpu_custom_call.1} parent=0 // pred_fallthru
    _
  %v21 = vld [vmem:[%s0] sm:$0xf]
  %v22 = vld [vmem:[%s0 + $0x4] sm:$0xf]
  %v23 = vld [vmem:[%s0 + $0x8] sm:$0xf]
  %v24 = vld [vmem:[%s0 + $0xc] sm:$0xf]
  %v25 = vld [vmem:[%s0 + $0x10] sm:$0xf]
  %v26 = vld [vmem:[%s0 + $0x14] sm:$0xf]
  %v27 = vld [vmem:[%s0 + $0x18] sm:$0xf]
  %v28 = vld [vmem:[%s0 + $0x1c] sm:$0xf]
  %v29 = vld [vmem:[%s0 + $0x20] sm:$0xf]
  %v30 = vld [vmem:[%s0 + $0x24] sm:$0xf]
  %v31 = vld [vmem:[%s0 + $0x28] sm:$0xf]
  %v32 = vld [vmem:[%s0 + $0x2c] sm:$0xf]
  %v33 = vld [vmem:[%s0 + $0x30] sm:$0xf]
  %v34 = vld [vmem:[%s0 + $0x34] sm:$0xf]
  %v35 = vld [vmem:[%s0 + $0x38] sm:$0xf]
  %v36 = vld [vmem:[%s0 + $0x3c] sm:$0xf]
  %v37 = vld [vmem:[%s0 + $0x40] sm:$0xf]
  %v38 = vld [vmem:[%s0 + $0x44] sm:$0xf]
  %v39 = vld [vmem:[%s0 + $0x48] sm:$0xf]
  %v40 = vld [vmem:[%s0 + $0x4c] sm:$0xf]
  %v41 = vld [vmem:[%s0 + $0x50] sm:$0xf]
  %v42 = vld [vmem:[%s0 + $0x54] sm:$0xf]
  %v43 = vld [vmem:[%s0 + $0x58] sm:$0xf]
  %v44 = vld [vmem:[%s0 + $0x5c] sm:$0xf]
  %v45 = vld [vmem:[%s0 + $0x60] sm:$0xf]
  %v46 = vld [vmem:[%s0 + $0x64] sm:$0xf]
  %v47 = vld [vmem:[%s0 + $0x68] sm:$0xf]
  %v48 = vld [vmem:[%s0 + $0x6c] sm:$0xf]
  %v49 = vld [vmem:[%s0 + $0x70] sm:$0xf]
  %v50 = vld [vmem:[%s0 + $0x74] sm:$0xf]
  %v51 = vld [vmem:[%s0 + $0x78] sm:$0xf]
  %v52 = vld [vmem:[%s0 + $0x7c] sm:$0xf]
  %v53 = vld [vmem:[%s1] sm:$0xf]
  %v54 = vld [vmem:[%s1 + $0x4] sm:$0xf]
  %v55 = vld [vmem:[%s1 + $0x8] sm:$0xf]
  %v56 = vld [vmem:[%s1 + $0xc] sm:$0xf]
  %v57 = vld [vmem:[%s1 + $0x10] sm:$0xf]
  %v58 = vld [vmem:[%s1 + $0x14] sm:$0xf]
  %v59 = vld [vmem:[%s1 + $0x18] sm:$0xf]
  %v60 = vld [vmem:[%s1 + $0x1c] sm:$0xf]
  %v61 = vld [vmem:[%s2] sm:$0x1]
  %v63 = vlaneseq
  %v64 = vshrl.u32 %v63, 7
  %v65 = vsub.s32 0, %v64
  %v66 = vrot.slane %v61, %v65
  %v100 = vunpack.c.l.b16 %v21
  %v101 = vunpack.c.l.b16 %v22
  %v102 = vunpack.c.l.b16 %v23
  %v103 = vunpack.c.l.b16 %v24
  %v104 = vunpack.c.l.b16 %v25
  %v105 = vunpack.c.l.b16 %v26
  %v106 = vunpack.c.l.b16 %v27
  %v107 = vunpack.c.l.b16 %v28
  %v108 = vunpack.c.l.b16 %v29
  %v109 = vunpack.c.l.b16 %v30
  %v110 = vunpack.c.l.b16 %v31
  %v111 = vunpack.c.l.b16 %v32
  %v112 = vunpack.c.l.b16 %v33
  %v113 = vunpack.c.l.b16 %v34
  %v114 = vunpack.c.l.b16 %v35
  %v115 = vunpack.c.l.b16 %v36
  %v116 = vunpack.c.l.b16 %v37
  %v117 = vunpack.c.l.b16 %v38
  %v118 = vunpack.c.l.b16 %v39
  %v119 = vunpack.c.l.b16 %v40
  %v120 = vunpack.c.l.b16 %v41
  %v121 = vunpack.c.l.b16 %v42
  %v122 = vunpack.c.l.b16 %v43
  %v123 = vunpack.c.l.b16 %v44
  %v124 = vunpack.c.l.b16 %v45
  %v125 = vunpack.c.l.b16 %v46
  %v126 = vunpack.c.l.b16 %v47
  %v127 = vunpack.c.l.b16 %v48
  %v128 = vunpack.c.l.b16 %v49
  %v129 = vunpack.c.l.b16 %v50
  %v130 = vunpack.c.l.b16 %v51
  %v131 = vunpack.c.l.b16 %v52
  %v132 = vpack.c.b16 %v101, %v100
  %v133 = vpack.c.b16 %v103, %v102
  %v134 = vpack.c.b16 %v105, %v104
  %v135 = vpack.c.b16 %v107, %v106
  %v136 = vpack.c.b16 %v109, %v108
  %v137 = vpack.c.b16 %v111, %v110
  %v138 = vpack.c.b16 %v113, %v112
  %v139 = vpack.c.b16 %v115, %v114
  %v140 = vpack.c.b16 %v117, %v116
  %v141 = vpack.c.b16 %v119, %v118
  %v142 = vpack.c.b16 %v121, %v120
  %v143 = vpack.c.b16 %v123, %v122
  %v144 = vpack.c.b16 %v125, %v124
  %v145 = vpack.c.b16 %v127, %v126
  %v146 = vpack.c.b16 %v129, %v128
  %v147 = vpack.c.b16 %v131, %v130
  %v156 = vunpack.c.l.b16 %v53
  %v157 = vunpack.c.l.b16 %v54
  %v158 = vunpack.c.l.b16 %v55
  %v159 = vunpack.c.l.b16 %v56
  %v160 = vunpack.c.l.b16 %v57
  %v161 = vunpack.c.l.b16 %v58
  %v162 = vunpack.c.l.b16 %v59
  %v163 = vunpack.c.l.b16 %v60
  %v164 = vpack.c.b16 %v157, %v156
  %v165 = vpack.c.b16 %v159, %v158
  %v166 = vpack.c.b16 %v161, %v160
  %v167 = vpack.c.b16 %v163, %v162
  %vm168 = vcmask 261120
  %v170 = vsel %vm168, %v132, 0
  %v173 = vsel %vm168, %v133, 0
  %v176 = vsel %vm168, %v134, 0
  %v179 = vsel %vm168, %v135, 0
  %v182 = vsel %vm168, %v136, 0
  %v185 = vsel %vm168, %v137, 0
  %v188 = vsel %vm168, %v138, 0
  %v191 = vsel %vm168, %v139, 0
  %v194 = vsel %vm168, %v140, 0
  %v197 = vsel %vm168, %v141, 0
  %v200 = vsel %vm168, %v142, 0
  %v203 = vsel %vm168, %v143, 0
  %v206 = vsel %vm168, %v144, 0
  %v209 = vsel %vm168, %v145, 0
  %v212 = vsel %vm168, %v146, 0
  %v215 = vsel %vm168, %v147, 0
  %v218 = vsel %vm168, %v164, 0
  %v221 = vsel %vm168, %v165, 0
  %v224 = vsel %vm168, %v166, 0
  %v227 = vsel %vm168, %v167, 0
  %229 = vmatprep.subr.bf16.mxu0 0
  %230 = vmatpush1.bf16.xpose.msra.mxu0 %v218
  %231 = vmatprep.subr.bf16.mxu0 0
  %232 = vmatpush1.bf16.xpose.msra.mxu0 %v221
  %233 = vmatprep.subr.bf16.mxu0 0
  %234 = vmatpush1.bf16.xpose.msra.mxu0 %v224
  %235 = vmatprep.subr.bf16.mxu0 0
  %236 = vmatpush1.bf16.xpose.msra.mxu0 %v227
  %237 = vmatprep.subr.bf16.mxu0 0
  %238 = vmatpush1.bf16.xpose.msra.mxu0 0
  %239 = vmatprep.subr.bf16.mxu0 0
  %240 = vmatpush1.bf16.xpose.msra.mxu0 0
  %241 = vmatprep.subr.bf16.mxu0 0
  %242 = vmatpush1.bf16.xpose.msra.mxu0 0
  %243 = vmatprep.subr.bf16.mxu0 0
  %244 = vmatpush1.bf16.xpose.msra.mxu0 0
  %245 = vmatprep.subr.bf16.mxu0 0
  %246 = vmatpush1.bf16.xpose.msra.mxu0 0
  %247 = vmatprep.subr.bf16.mxu0 0
  %248 = vmatpush1.bf16.xpose.msra.mxu0 0
  %249 = vmatprep.subr.bf16.mxu0 0
  %250 = vmatpush1.bf16.xpose.msra.mxu0 0
  %251 = vmatprep.subr.bf16.mxu0 0
  %252 = vmatpush1.bf16.xpose.msra.mxu0 0
  %253 = vmatprep.subr.bf16.mxu0 0
  %254 = vmatpush1.bf16.xpose.msra.mxu0 0
  %255 = vmatprep.subr.bf16.mxu0 0
  %256 = vmatpush1.bf16.xpose.msra.mxu0 0
  %257 = vmatprep.subr.bf16.mxu0 0
  %258 = vmatpush1.bf16.xpose.msra.mxu0 0
  %259 = vmatprep.subr.bf16.mxu0 0
  %260 = vmatpush1.bf16.xpose.msra.mxu0 0
  %261 = vmatprep.mubr.bf16.mxu0 0
  %262 = vmatmul.mubr.bf16.gmra.mrb[0].mxu0 %v170
  %v263 = vpop.f32.mrb[0].mxu0
  %v264 = vadd.f32 %v66, %v263
  %v265 = vpop.f32.mrb[0].mxu0
  %v266 = vpop.f32.mrb[0].mxu0
  %v267 = vadd.f32 %v66, %v266
  %v268 = vpop.f32.mrb[0].mxu0
  %269 = vmatprep.mubr.bf16.mxu0 0
  %270 = vmatmul.mubr.bf16.gmra.mrb[0].mxu0 %v173
  %v271 = vpop.f32.mrb[0].mxu0
  %v272 = vadd.f32 %v66, %v271
  %v273 = vpop.f32.mrb[0].mxu0
  %v274 = vpop.f32.mrb[0].mxu0
  %v275 = vadd.f32 %v66, %v274
  %v276 = vpop.f32.mrb[0].mxu0
  %277 = vmatprep.mubr.bf16.mxu0 0
  %278 = vmatmul.mubr.bf16.gmra.mrb[0].mxu0 %v176
  %v279 = vpop.f32.mrb[0].mxu0
  %v280 = vadd.f32 %v66, %v279
  %v281 = vpop.f32.mrb[0].mxu0
  %v282 = vpop.f32.mrb[0].mxu0
  %v283 = vadd.f32 %v66, %v282
  %v284 = vpop.f32.mrb[0].mxu0
  %285 = vmatprep.mubr.bf16.mxu0 0
  %286 = vmatmul.mubr.bf16.gmra.mrb[0].mxu0 %v179
  %v287 = vpop.f32.mrb[0].mxu0
  %v288 = vadd.f32 %v66, %v287
  %v289 = vpop.f32.mrb[0].mxu0
  %v290 = vpop.f32.mrb[0].mxu0
  %v291 = vadd.f32 %v66, %v290
  %v292 = vpop.f32.mrb[0].mxu0
  %293 = vmatprep.mubr.bf16.mxu0 0
  %294 = vmatmul.mubr.bf16.gmra.mrb[0].mxu0 %v182
  %v295 = vpop.f32.mrb[0].mxu0
  %v296 = vadd.f32 %v66, %v295
  %v297 = vpop.f32.mrb[0].mxu0
  %v298 = vpop.f32.mrb[0].mxu0
  %v299 = vadd.f32 %v66, %v298
  %v300 = vpop.f32.mrb[0].mxu0
  %301 = vmatprep.mubr.bf16.mxu0 0
  %302 = vmatmul.mubr.bf16.gmra.mrb[0].mxu0 %v185
  %v303 = vpop.f32.mrb[0].mxu0
  %v304 = vadd.f32 %v66, %v303
  %v305 = vpop.f32.mrb[0].mxu0
  %v306 = vpop.f32.mrb[0].mxu0
  %v307 = vadd.f32 %v66, %v306
  %v308 = vpop.f32.mrb[0].mxu0
  %309 = vmatprep.mubr.bf16.mxu0 0
  %310 = vmatmul.mubr.bf16.gmra.mrb[0].mxu0 %v188
  %v311 = vpop.f32.mrb[0].mxu0
  %v312 = vadd.f32 %v66, %v311
  %v313 = vpop.f32.mrb[0].mxu0
  %v314 = vpop.f32.mrb[0].mxu0
  %v315 = vadd.f32 %v66, %v314
  %v316 = vpop.f32.mrb[0].mxu0
  %317 = vmatprep.mubr.bf16.mxu0 0
  %318 = vmatmul.mubr.bf16.gmra.mrb[0].mxu0 %v191
  %v319 = vpop.f32.mrb[0].mxu0
  %v320 = vadd.f32 %v66, %v319
  %v321 = vpop.f32.mrb[0].mxu0
  %v322 = vpop.f32.mrb[0].mxu0
  %v323 = vadd.f32 %v66, %v322
  %v324 = vpop.f32.mrb[0].mxu0
  %325 = vmatprep.mubr.bf16.mxu0 0
  %326 = vmatmul.mubr.bf16.gmra.mrb[0].mxu0 %v194
  %v327 = vpop.f32.mrb[0].mxu0
  %v328 = vadd.f32 %v66, %v327
  %v329 = vpop.f32.mrb[0].mxu0
  %v330 = vpop.f32.mrb[0].mxu0
  %v331 = vadd.f32 %v66, %v330
  %v332 = vpop.f32.mrb[0].mxu0
  %333 = vmatprep.mubr.bf16.mxu0 0
  %334 = vmatmul.mubr.bf16.gmra.mrb[0].mxu0 %v197
  %v335 = vpop.f32.mrb[0].mxu0
  %v336 = vadd.f32 %v66, %v335
  %v337 = vpop.f32.mrb[0].mxu0
  %v338 = vpop.f32.mrb[0].mxu0
  %v339 = vadd.f32 %v66, %v338
  %v340 = vpop.f32.mrb[0].mxu0
  %341 = vmatprep.mubr.bf16.mxu0 0
  %342 = vmatmul.mubr.bf16.gmra.mrb[0].mxu0 %v200
  %v343 = vpop.f32.mrb[0].mxu0
  %v344 = vadd.f32 %v66, %v343
  %v345 = vpop.f32.mrb[0].mxu0
  %v346 = vpop.f32.mrb[0].mxu0
  %v347 = vadd.f32 %v66, %v346
  %v348 = vpop.f32.mrb[0].mxu0
  %349 = vmatprep.mubr.bf16.mxu0 0
  %350 = vmatmul.mubr.bf16.gmra.mrb[0].mxu0 %v203
  %v351 = vpop.f32.mrb[0].mxu0
  %v352 = vadd.f32 %v66, %v351
  %v353 = vpop.f32.mrb[0].mxu0
  %v354 = vpop.f32.mrb[0].mxu0
  %v355 = vadd.f32 %v66, %v354
  %v356 = vpop.f32.mrb[0].mxu0
  %357 = vmatprep.mubr.bf16.mxu0 0
  %358 = vmatmul.mubr.bf16.gmra.mrb[0].mxu0 %v206
  %v359 = vpop.f32.mrb[0].mxu0
  %v360 = vadd.f32 %v66, %v359
  %v361 = vpop.f32.mrb[0].mxu0
  %v362 = vpop.f32.mrb[0].mxu0
  %v363 = vadd.f32 %v66, %v362
  %v364 = vpop.f32.mrb[0].mxu0
  %365 = vmatprep.mubr.bf16.mxu0 0
  %366 = vmatmul.mubr.bf16.gmra.mrb[0].mxu0 %v209
  %v367 = vpop.f32.mrb[0].mxu0
  %v368 = vadd.f32 %v66, %v367
  %v369 = vpop.f32.mrb[0].mxu0
  %v370 = vpop.f32.mrb[0].mxu0
  %v371 = vadd.f32 %v66, %v370
  %v372 = vpop.f32.mrb[0].mxu0
  %373 = vmatprep.mubr.bf16.mxu0 0
  %374 = vmatmul.mubr.bf16.gmra.mrb[0].mxu0 %v212
  %v375 = vpop.f32.mrb[0].mxu0
  %v376 = vadd.f32 %v66, %v375
  %v377 = vpop.f32.mrb[0].mxu0
  %v378 = vpop.f32.mrb[0].mxu0
  %v379 = vadd.f32 %v66, %v378
  %v380 = vpop.f32.mrb[0].mxu0
  %381 = vmatprep.mubr.bf16.mxu0 0
  %382 = vmatmul.mubr.bf16.gmra.mrb[0].mxu0 %v215
  %v383 = vpop.f32.mrb[0].mxu0
  %v384 = vadd.f32 %v66, %v383
  %v385 = vpop.f32.mrb[0].mxu0
  %v386 = vpop.f32.mrb[0].mxu0
  %v387 = vadd.f32 %v66, %v386
  %v388 = vpop.f32.mrb[0].mxu0
  %389 = vdwg.mxu0
  %v390 = vmax.f32 %v264, 0.0
  %v391 = vmax.f32 %v267, 0.0
  %v392 = vmax.f32 %v272, 0.0
  %v393 = vmax.f32 %v275, 0.0
  %v394 = vmax.f32 %v280, 0.0
  %v395 = vmax.f32 %v283, 0.0
  %v396 = vmax.f32 %v288, 0.0
  %v397 = vmax.f32 %v291, 0.0
  %v398 = vmax.f32 %v296, 0.0
  %v399 = vmax.f32 %v299, 0.0
  %v400 = vmax.f32 %v304, 0.0
  %v401 = vmax.f32 %v307, 0.0
  %v402 = vmax.f32 %v312, 0.0
  %v403 = vmax.f32 %v315, 0.0
  %v404 = vmax.f32 %v320, 0.0
  %v405 = vmax.f32 %v323, 0.0
  %v406 = vmax.f32 %v328, 0.0
  %v407 = vmax.f32 %v331, 0.0
  %v408 = vmax.f32 %v336, 0.0
  %v409 = vmax.f32 %v339, 0.0
  %v410 = vmax.f32 %v344, 0.0
  %v411 = vmax.f32 %v347, 0.0
  %v412 = vmax.f32 %v352, 0.0
  %v413 = vmax.f32 %v355, 0.0
  %v414 = vmax.f32 %v360, 0.0
  %v415 = vmax.f32 %v363, 0.0
  %v416 = vmax.f32 %v368, 0.0
  %v417 = vmax.f32 %v371, 0.0
  %v418 = vmax.f32 %v376, 0.0
  %v419 = vmax.f32 %v379, 0.0
  %v420 = vmax.f32 %v384, 0.0
  %v421 = vmax.f32 %v387, 0.0
  %v422 = vpack.c.bf16 %v391, %v390
  %v423 = vpack.c.bf16 %v393, %v392
  %v424 = vpack.c.bf16 %v395, %v394
  %v425 = vpack.c.bf16 %v397, %v396
  %v426 = vpack.c.bf16 %v399, %v398
  %v427 = vpack.c.bf16 %v401, %v400
  %v428 = vpack.c.bf16 %v403, %v402
  %v429 = vpack.c.bf16 %v405, %v404
  %v430 = vpack.c.bf16 %v407, %v406
  %v431 = vpack.c.bf16 %v409, %v408
  %v432 = vpack.c.bf16 %v411, %v410
  %v433 = vpack.c.bf16 %v413, %v412
  %v434 = vpack.c.bf16 %v415, %v414
  %v435 = vpack.c.bf16 %v417, %v416
  %v436 = vpack.c.bf16 %v419, %v418
  %v437 = vpack.c.bf16 %v421, %v420
  %v438 = vld [vmem:[%s3] sm:$0xf]
  %v439 = vld [vmem:[%s3 + $0x4] sm:$0xf]
  %v440 = vld [vmem:[%s4] sm:$0x1]
  %v442 = vlaneseq
  %v443 = vshrl.u32 %v442, 7
  %v444 = vsub.s32 0, %v443
  %v445 = vrot.slane %v440, %v444
  %v449 = vunpack.c.l.b16 %v438
  %v450 = vunpack.c.l.b16 %v439
  %v451 = vpack.c.b16 %v450, %v449
  %vm452 = vcmask 523264
  %v454 = vsel %vm452, %v422, 0
  %v457 = vsel %vm452, %v423, 0
  %v460 = vsel %vm452, %v424, 0
  %v463 = vsel %vm452, %v425, 0
  %v466 = vsel %vm452, %v426, 0
  %v469 = vsel %vm452, %v427, 0
  %v472 = vsel %vm452, %v428, 0
  %v475 = vsel %vm452, %v429, 0
  %v478 = vsel %vm452, %v430, 0
  %v481 = vsel %vm452, %v431, 0
  %v484 = vsel %vm452, %v432, 0
  %v487 = vsel %vm452, %v433, 0
  %v490 = vsel %vm452, %v434, 0
  %v493 = vsel %vm452, %v435, 0
  %v496 = vsel %vm452, %v436, 0
  %v499 = vsel %vm452, %v437, 0
  %v502 = vsel %vm452, %v451, 0
  %504 = vmatprep.subr.bf16.mxu0 0
  %505 = vmatpush1.bf16.xpose.msra.mxu0 %v502
  %506 = vmatprep.subr.bf16.mxu0 0
  %507 = vmatpush1.bf16.xpose.msra.mxu0 0
  %508 = vmatprep.subr.bf16.mxu0 0
  %509 = vmatpush1.bf16.xpose.msra.mxu0 0
  %510 = vmatprep.subr.bf16.mxu0 0
  %511 = vmatpush1.bf16.xpose.msra.mxu0 0
  %512 = vmatprep.subr.bf16.mxu0 0
  %513 = vmatpush1.bf16.xpose.msra.mxu0 0
  %514 = vmatprep.subr.bf16.mxu0 0
  %515 = vmatpush1.bf16.xpose.msra.mxu0 0
  %516 = vmatprep.subr.bf16.mxu0 0
  %517 = vmatpush1.bf16.xpose.msra.mxu0 0
  %518 = vmatprep.subr.bf16.mxu0 0
  %519 = vmatpush1.bf16.xpose.msra.mxu0 0
  %520 = vmatprep.subr.bf16.mxu0 0
  %521 = vmatpush1.bf16.xpose.msra.mxu0 0
  %522 = vmatprep.subr.bf16.mxu0 0
  %523 = vmatpush1.bf16.xpose.msra.mxu0 0
  %524 = vmatprep.subr.bf16.mxu0 0
  %525 = vmatpush1.bf16.xpose.msra.mxu0 0
  %526 = vmatprep.subr.bf16.mxu0 0
  %527 = vmatpush1.bf16.xpose.msra.mxu0 0
  %528 = vmatprep.subr.bf16.mxu0 0
  %529 = vmatpush1.bf16.xpose.msra.mxu0 0
  %530 = vmatprep.subr.bf16.mxu0 0
  %531 = vmatpush1.bf16.xpose.msra.mxu0 0
  %532 = vmatprep.subr.bf16.mxu0 0
  %533 = vmatpush1.bf16.xpose.msra.mxu0 0
  %534 = vmatprep.subr.bf16.mxu0 0
  %535 = vmatpush1.bf16.xpose.msra.mxu0 0
  %536 = vmatprep.mubr.bf16.mxu0 0
  %537 = vmatmul.mubr.bf16.gmra.mrb[0].mxu0 %v454
  %v538 = vpop.f32.mrb[0].mxu0
  %v539 = vadd.f32 %v445, %v538
  %v540 = vpop.f32.mrb[0].mxu0
  %v541 = vpop.f32.mrb[0].mxu0
  %v542 = vadd.f32 %v445, %v541
  %v543 = vpop.f32.mrb[0].mxu0
  %544 = vmatprep.mubr.bf16.mxu0 0
  %545 = vmatmul.mubr.bf16.gmra.mrb[0].mxu0 %v457
  %v546 = vpop.f32.mrb[0].mxu0
  %v547 = vadd.f32 %v445, %v546
  %v548 = vpop.f32.mrb[0].mxu0
  %v549 = vpop.f32.mrb[0].mxu0
  %v550 = vadd.f32 %v445, %v549
  %v551 = vpop.f32.mrb[0].mxu0
  %552 = vmatprep.mubr.bf16.mxu0 0
  %553 = vmatmul.mubr.bf16.gmra.mrb[0].mxu0 %v460
  %v554 = vpop.f32.mrb[0].mxu0
  %v555 = vadd.f32 %v445, %v554
  %v556 = vpop.f32.mrb[0].mxu0
  %v557 = vpop.f32.mrb[0].mxu0
  %v558 = vadd.f32 %v445, %v557
  %v559 = vpop.f32.mrb[0].mxu0
  %560 = vmatprep.mubr.bf16.mxu0 0
  %561 = vmatmul.mubr.bf16.gmra.mrb[0].mxu0 %v463
  %v562 = vpop.f32.mrb[0].mxu0
  %v563 = vadd.f32 %v445, %v562
  %v564 = vpop.f32.mrb[0].mxu0
  %v565 = vpop.f32.mrb[0].mxu0
  %v566 = vadd.f32 %v445, %v565
  %v567 = vpop.f32.mrb[0].mxu0
  %568 = vmatprep.mubr.bf16.mxu0 0
  %569 = vmatmul.mubr.bf16.gmra.mrb[0].mxu0 %v466
  %v570 = vpop.f32.mrb[0].mxu0
  %v571 = vadd.f32 %v445, %v570
  %v572 = vpop.f32.mrb[0].mxu0
  %v573 = vpop.f32.mrb[0].mxu0
  %v574 = vadd.f32 %v445, %v573
  %v575 = vpop.f32.mrb[0].mxu0
  %576 = vmatprep.mubr.bf16.mxu0 0
  %577 = vmatmul.mubr.bf16.gmra.mrb[0].mxu0 %v469
  %v578 = vpop.f32.mrb[0].mxu0
  %v579 = vadd.f32 %v445, %v578
  %v580 = vpop.f32.mrb[0].mxu0
  %v581 = vpop.f32.mrb[0].mxu0
  %v582 = vadd.f32 %v445, %v581
  %v583 = vpop.f32.mrb[0].mxu0
  %584 = vmatprep.mubr.bf16.mxu0 0
  %585 = vmatmul.mubr.bf16.gmra.mrb[0].mxu0 %v472
  %v586 = vpop.f32.mrb[0].mxu0
  %v587 = vadd.f32 %v445, %v586
  %v588 = vpop.f32.mrb[0].mxu0
  %v589 = vpop.f32.mrb[0].mxu0
  %v590 = vadd.f32 %v445, %v589
  %v591 = vpop.f32.mrb[0].mxu0
  %592 = vmatprep.mubr.bf16.mxu0 0
  %593 = vmatmul.mubr.bf16.gmra.mrb[0].mxu0 %v475
  %v594 = vpop.f32.mrb[0].mxu0
  %v595 = vadd.f32 %v445, %v594
  %v596 = vpop.f32.mrb[0].mxu0
  %v597 = vpop.f32.mrb[0].mxu0
  %v598 = vadd.f32 %v445, %v597
  %v599 = vpop.f32.mrb[0].mxu0
  %600 = vmatprep.mubr.bf16.mxu0 0
  %601 = vmatmul.mubr.bf16.gmra.mrb[0].mxu0 %v478
  %v602 = vpop.f32.mrb[0].mxu0
  %v603 = vadd.f32 %v445, %v602
  %v604 = vpop.f32.mrb[0].mxu0
  %v605 = vpop.f32.mrb[0].mxu0
  %v606 = vadd.f32 %v445, %v605
  %v607 = vpop.f32.mrb[0].mxu0
  %608 = vmatprep.mubr.bf16.mxu0 0
  %609 = vmatmul.mubr.bf16.gmra.mrb[0].mxu0 %v481
  %v610 = vpop.f32.mrb[0].mxu0
  %v611 = vadd.f32 %v445, %v610
  %v612 = vpop.f32.mrb[0].mxu0
  %v613 = vpop.f32.mrb[0].mxu0
  %v614 = vadd.f32 %v445, %v613
  %v615 = vpop.f32.mrb[0].mxu0
  %616 = vmatprep.mubr.bf16.mxu0 0
  %617 = vmatmul.mubr.bf16.gmra.mrb[0].mxu0 %v484
  %v618 = vpop.f32.mrb[0].mxu0
  %v619 = vadd.f32 %v445, %v618
  %v620 = vpop.f32.mrb[0].mxu0
  %v621 = vpop.f32.mrb[0].mxu0
  %v622 = vadd.f32 %v445, %v621
  %v623 = vpop.f32.mrb[0].mxu0
  %624 = vmatprep.mubr.bf16.mxu0 0
  %625 = vmatmul.mubr.bf16.gmra.mrb[0].mxu0 %v487
  %v626 = vpop.f32.mrb[0].mxu0
  %v627 = vadd.f32 %v445, %v626
  %v628 = vpop.f32.mrb[0].mxu0
  %v629 = vpop.f32.mrb[0].mxu0
  %v630 = vadd.f32 %v445, %v629
  %v631 = vpop.f32.mrb[0].mxu0
  %632 = vmatprep.mubr.bf16.mxu0 0
  %633 = vmatmul.mubr.bf16.gmra.mrb[0].mxu0 %v490
  %v634 = vpop.f32.mrb[0].mxu0
  %v635 = vadd.f32 %v445, %v634
  %v636 = vpop.f32.mrb[0].mxu0
  %v637 = vpop.f32.mrb[0].mxu0
  %v638 = vadd.f32 %v445, %v637
  %v639 = vpop.f32.mrb[0].mxu0
  %640 = vmatprep.mubr.bf16.mxu0 0
  %641 = vmatmul.mubr.bf16.gmra.mrb[0].mxu0 %v493
  %v642 = vpop.f32.mrb[0].mxu0
  %v643 = vadd.f32 %v445, %v642
  %v644 = vpop.f32.mrb[0].mxu0
  %v645 = vpop.f32.mrb[0].mxu0
  %v646 = vadd.f32 %v445, %v645
  %v647 = vpop.f32.mrb[0].mxu0
  %648 = vmatprep.mubr.bf16.mxu0 0
  %649 = vmatmul.mubr.bf16.gmra.mrb[0].mxu0 %v496
  %v650 = vpop.f32.mrb[0].mxu0
  %v651 = vadd.f32 %v445, %v650
  %v652 = vpop.f32.mrb[0].mxu0
  %v653 = vpop.f32.mrb[0].mxu0
  %v654 = vadd.f32 %v445, %v653
  %v655 = vpop.f32.mrb[0].mxu0
  %656 = vmatprep.mubr.bf16.mxu0 0
  %657 = vmatmul.mubr.bf16.gmra.mrb[0].mxu0 %v499
  %v658 = vpop.f32.mrb[0].mxu0
  %v659 = vadd.f32 %v445, %v658
  %v660 = vpop.f32.mrb[0].mxu0
  %v661 = vpop.f32.mrb[0].mxu0
  %v662 = vadd.f32 %v445, %v661
  %v663 = vpop.f32.mrb[0].mxu0
  %664 = vdwg.mxu0
  %v665 = vsub.f32 0.0, %v539
  %v666 = vsub.f32 0.0, %v542
  %v667 = vsub.f32 0.0, %v547
  %v668 = vsub.f32 0.0, %v550
  %v669 = vsub.f32 0.0, %v555
  %v670 = vsub.f32 0.0, %v558
  %v671 = vsub.f32 0.0, %v563
  %v672 = vsub.f32 0.0, %v566
  %v673 = vsub.f32 0.0, %v571
  %v674 = vsub.f32 0.0, %v574
  %v675 = vsub.f32 0.0, %v579
  %v676 = vsub.f32 0.0, %v582
  %v677 = vsub.f32 0.0, %v587
  %v678 = vsub.f32 0.0, %v590
  %v679 = vsub.f32 0.0, %v595
  %v680 = vsub.f32 0.0, %v598
  %v681 = vsub.f32 0.0, %v603
  %v682 = vsub.f32 0.0, %v606
  %v683 = vsub.f32 0.0, %v611
  %v684 = vsub.f32 0.0, %v614
  %v685 = vsub.f32 0.0, %v619
  %v686 = vsub.f32 0.0, %v622
  %v687 = vsub.f32 0.0, %v627
  %v688 = vsub.f32 0.0, %v630
  %v689 = vsub.f32 0.0, %v635
  %v690 = vsub.f32 0.0, %v638
  %v691 = vsub.f32 0.0, %v643
  %v692 = vsub.f32 0.0, %v646
  %v693 = vsub.f32 0.0, %v651
  %v694 = vsub.f32 0.0, %v654
  %v695 = vsub.f32 0.0, %v659
  %v696 = vsub.f32 0.0, %v662
  %v697 = vmul.f32 %v665, 1.442695
  %v698 = vpow.pop %v697
  %v699 = vmul.f32 %v666, 1.442695
  %v700 = vpow.pop %v699
  %v701 = vmul.f32 %v667, 1.442695
  %v702 = vpow.pop %v701
  %v703 = vmul.f32 %v668, 1.442695
  %v704 = vpow.pop %v703
  %v705 = vmul.f32 %v669, 1.442695
  %v706 = vpow.pop %v705
  %v707 = vmul.f32 %v670, 1.442695
  %v708 = vpow.pop %v707
  %v709 = vmul.f32 %v671, 1.442695
  %v710 = vpow.pop %v709
  %v711 = vmul.f32 %v672, 1.442695
  %v712 = vpow.pop %v711
  %v713 = vmul.f32 %v673, 1.442695
  %v714 = vpow.pop %v713
  %v715 = vmul.f32 %v674, 1.442695
  %v716 = vpow.pop %v715
  %v717 = vmul.f32 %v675, 1.442695
  %v718 = vpow.pop %v717
  %v719 = vmul.f32 %v676, 1.442695
  %v720 = vpow.pop %v719
  %v721 = vmul.f32 %v677, 1.442695
  %v722 = vpow.pop %v721
  %v723 = vmul.f32 %v678, 1.442695
  %v724 = vpow.pop %v723
  %v725 = vmul.f32 %v679, 1.442695
  %v726 = vpow.pop %v725
  %v727 = vmul.f32 %v680, 1.442695
  %v728 = vpow.pop %v727
  %v729 = vmul.f32 %v681, 1.442695
  %v730 = vpow.pop %v729
  %v731 = vmul.f32 %v682, 1.442695
  %v732 = vpow.pop %v731
  %v733 = vmul.f32 %v683, 1.442695
  %v734 = vpow.pop %v733
  %v735 = vmul.f32 %v684, 1.442695
  %v736 = vpow.pop %v735
  %v737 = vmul.f32 %v685, 1.442695
  %v738 = vpow.pop %v737
  %v739 = vmul.f32 %v686, 1.442695
  %v740 = vpow.pop %v739
  %v741 = vmul.f32 %v687, 1.442695
  %v742 = vpow.pop %v741
  %v743 = vmul.f32 %v688, 1.442695
  %v744 = vpow.pop %v743
  %v745 = vmul.f32 %v689, 1.442695
  %v746 = vpow.pop %v745
  %v747 = vmul.f32 %v690, 1.442695
  %v748 = vpow.pop %v747
  %v749 = vmul.f32 %v691, 1.442695
  %v750 = vpow.pop %v749
  %v751 = vmul.f32 %v692, 1.442695
  %v752 = vpow.pop %v751
  %v753 = vmul.f32 %v693, 1.442695
  %v754 = vpow.pop %v753
  %v755 = vmul.f32 %v694, 1.442695
  %v756 = vpow.pop %v755
  %v757 = vmul.f32 %v695, 1.442695
  %v758 = vpow.pop %v757
  %v759 = vmul.f32 %v696, 1.442695
  %v760 = vpow.pop %v759
  %v761 = vadd.f32 %v698, 1.0
  %v762 = vadd.f32 %v700, 1.0
  %v763 = vadd.f32 %v702, 1.0
  %v764 = vadd.f32 %v704, 1.0
  %v765 = vadd.f32 %v706, 1.0
  %v766 = vadd.f32 %v708, 1.0
  %v767 = vadd.f32 %v710, 1.0
  %v768 = vadd.f32 %v712, 1.0
  %v769 = vadd.f32 %v714, 1.0
  %v770 = vadd.f32 %v716, 1.0
  %v771 = vadd.f32 %v718, 1.0
  %v772 = vadd.f32 %v720, 1.0
  %v773 = vadd.f32 %v722, 1.0
  %v774 = vadd.f32 %v724, 1.0
  %v775 = vadd.f32 %v726, 1.0
  %v776 = vadd.f32 %v728, 1.0
  %v777 = vadd.f32 %v730, 1.0
  %v778 = vadd.f32 %v732, 1.0
  %v779 = vadd.f32 %v734, 1.0
  %v780 = vadd.f32 %v736, 1.0
  %v781 = vadd.f32 %v738, 1.0
  %v782 = vadd.f32 %v740, 1.0
  %v783 = vadd.f32 %v742, 1.0
  %v784 = vadd.f32 %v744, 1.0
  %v785 = vadd.f32 %v746, 1.0
  %v786 = vadd.f32 %v748, 1.0
  %v787 = vadd.f32 %v750, 1.0
  %v788 = vadd.f32 %v752, 1.0
  %v789 = vadd.f32 %v754, 1.0
  %v790 = vadd.f32 %v756, 1.0
  %v791 = vadd.f32 %v758, 1.0
  %v792 = vadd.f32 %v760, 1.0
  %v793 = vrcp.pop %v761
  %v794 = vrcp.pop %v762
  %v795 = vrcp.pop %v763
  %v796 = vrcp.pop %v764
  %v797 = vrcp.pop %v765
  %v798 = vrcp.pop %v766
  %v799 = vrcp.pop %v767
  %v800 = vrcp.pop %v768
  %v801 = vrcp.pop %v769
  %v802 = vrcp.pop %v770
  %v803 = vrcp.pop %v771
  %v804 = vrcp.pop %v772
  %v805 = vrcp.pop %v773
  %v806 = vrcp.pop %v774
  %v807 = vrcp.pop %v775
  %v808 = vrcp.pop %v776
  %v809 = vrcp.pop %v777
  %v810 = vrcp.pop %v778
  %v811 = vrcp.pop %v779
  %v812 = vrcp.pop %v780
  %v813 = vrcp.pop %v781
  %v814 = vrcp.pop %v782
  %v815 = vrcp.pop %v783
  %v816 = vrcp.pop %v784
  %v817 = vrcp.pop %v785
  %v818 = vrcp.pop %v786
  %v819 = vrcp.pop %v787
  %v820 = vrcp.pop %v788
  %v821 = vrcp.pop %v789
  %v822 = vrcp.pop %v790
  %v823 = vrcp.pop %v791
  %v824 = vrcp.pop %v792
  %v825 = vpack.c.bf16 %v794, %v793
  %v826 = vpack.c.bf16 %v796, %v795
  %v827 = vpack.c.bf16 %v798, %v797
  %v828 = vpack.c.bf16 %v800, %v799
  %v829 = vpack.c.bf16 %v802, %v801
  %v830 = vpack.c.bf16 %v804, %v803
  %v831 = vpack.c.bf16 %v806, %v805
  %v832 = vpack.c.bf16 %v808, %v807
  %v833 = vpack.c.bf16 %v810, %v809
  %v834 = vpack.c.bf16 %v812, %v811
  %v835 = vpack.c.bf16 %v814, %v813
  %v836 = vpack.c.bf16 %v816, %v815
  %v837 = vpack.c.bf16 %v818, %v817
  %v838 = vpack.c.bf16 %v820, %v819
  %v839 = vpack.c.bf16 %v822, %v821
  %v840 = vpack.c.bf16 %v824, %v823
  %v857 = vunpack.c.l.b16 %v825
  %v858 = vunpack.c.h.b16 %v825
  %v859 = vunpack.c.l.b16 %v826
  %v860 = vunpack.c.h.b16 %v826
  %v861 = vunpack.c.l.b16 %v827
  %v862 = vunpack.c.h.b16 %v827
  %v863 = vunpack.c.l.b16 %v828
  %v864 = vunpack.c.h.b16 %v828
  %v865 = vunpack.c.l.b16 %v829
  %v866 = vunpack.c.h.b16 %v829
  %v867 = vunpack.c.l.b16 %v830
  %v868 = vunpack.c.h.b16 %v830
  %v869 = vunpack.c.l.b16 %v831
  %v870 = vunpack.c.h.b16 %v831
  %v871 = vunpack.c.l.b16 %v832
  %v872 = vunpack.c.h.b16 %v832
  %v873 = vunpack.c.l.b16 %v833
  %v874 = vunpack.c.h.b16 %v833
  %v875 = vunpack.c.l.b16 %v834
  %v876 = vunpack.c.h.b16 %v834
  %v877 = vunpack.c.l.b16 %v835
  %v878 = vunpack.c.h.b16 %v835
  %v879 = vunpack.c.l.b16 %v836
  %v880 = vunpack.c.h.b16 %v836
  %v881 = vunpack.c.l.b16 %v837
  %v882 = vunpack.c.h.b16 %v837
  %v883 = vunpack.c.l.b16 %v838
  %v884 = vunpack.c.h.b16 %v838
  %v885 = vunpack.c.l.b16 %v839
  %v886 = vunpack.c.h.b16 %v839
  %v887 = vunpack.c.l.b16 %v840
  %v888 = vunpack.c.h.b16 %v840
  %v889 = vpack.c.b16 %v857, %v857
  %v890 = vpack.c.b16 %v858, %v858
  %v891 = vpack.c.b16 %v859, %v859
  %v892 = vpack.c.b16 %v860, %v860
  %v893 = vpack.c.b16 %v861, %v861
  %v894 = vpack.c.b16 %v862, %v862
  %v895 = vpack.c.b16 %v863, %v863
  %v896 = vpack.c.b16 %v864, %v864
  %v897 = vpack.c.b16 %v865, %v865
  %v898 = vpack.c.b16 %v866, %v866
  %v899 = vpack.c.b16 %v867, %v867
  %v900 = vpack.c.b16 %v868, %v868
  %v901 = vpack.c.b16 %v869, %v869
  %v902 = vpack.c.b16 %v870, %v870
  %v903 = vpack.c.b16 %v871, %v871
  %v904 = vpack.c.b16 %v872, %v872
  %v905 = vpack.c.b16 %v873, %v873
  %v906 = vpack.c.b16 %v874, %v874
  %v907 = vpack.c.b16 %v875, %v875
  %v908 = vpack.c.b16 %v876, %v876
  %v909 = vpack.c.b16 %v877, %v877
  %v910 = vpack.c.b16 %v878, %v878
  %v911 = vpack.c.b16 %v879, %v879
  %v912 = vpack.c.b16 %v880, %v880
  %v913 = vpack.c.b16 %v881, %v881
  %v914 = vpack.c.b16 %v882, %v882
  %v915 = vpack.c.b16 %v883, %v883
  %v916 = vpack.c.b16 %v884, %v884
  %v917 = vpack.c.b16 %v885, %v885
  %v918 = vpack.c.b16 %v886, %v886
  %v919 = vpack.c.b16 %v887, %v887
  %v920 = vpack.c.b16 %v888, %v888
  %vm953 = vcmask 125952
  %954 = vst.msk [vmem:[%s5] sm:$0xf] %vm953, %v889
  %955 = vst.msk [vmem:[%s5 + $0x4] sm:$0xf] %vm953, %v890
  %956 = vst.msk [vmem:[%s5 + $0x8] sm:$0xf] %vm953, %v891
  %957 = vst.msk [vmem:[%s5 + $0xc] sm:$0xf] %vm953, %v892
  %958 = vst.msk [vmem:[%s5 + $0x10] sm:$0xf] %vm953, %v893
  %959 = vst.msk [vmem:[%s5 + $0x14] sm:$0xf] %vm953, %v894
  %960 = vst.msk [vmem:[%s5 + $0x18] sm:$0xf] %vm953, %v895
  %961 = vst.msk [vmem:[%s5 + $0x1c] sm:$0xf] %vm953, %v896
  %962 = vst.msk [vmem:[%s5 + $0x20] sm:$0xf] %vm953, %v897
  %963 = vst.msk [vmem:[%s5 + $0x24] sm:$0xf] %vm953, %v898
  %964 = vst.msk [vmem:[%s5 + $0x28] sm:$0xf] %vm953, %v899
  %965 = vst.msk [vmem:[%s5 + $0x2c] sm:$0xf] %vm953, %v900
  %966 = vst.msk [vmem:[%s5 + $0x30] sm:$0xf] %vm953, %v901
  %967 = vst.msk [vmem:[%s5 + $0x34] sm:$0xf] %vm953, %v902
  %968 = vst.msk [vmem:[%s5 + $0x38] sm:$0xf] %vm953, %v903
  %969 = vst.msk [vmem:[%s5 + $0x3c] sm:$0xf] %vm953, %v904
  %970 = vst.msk [vmem:[%s5 + $0x40] sm:$0xf] %vm953, %v905
  %971 = vst.msk [vmem:[%s5 + $0x44] sm:$0xf] %vm953, %v906
  %972 = vst.msk [vmem:[%s5 + $0x48] sm:$0xf] %vm953, %v907
  %973 = vst.msk [vmem:[%s5 + $0x4c] sm:$0xf] %vm953, %v908
  %974 = vst.msk [vmem:[%s5 + $0x50] sm:$0xf] %vm953, %v909
  %975 = vst.msk [vmem:[%s5 + $0x54] sm:$0xf] %vm953, %v910
  %976 = vst.msk [vmem:[%s5 + $0x58] sm:$0xf] %vm953, %v911
  %977 = vst.msk [vmem:[%s5 + $0x5c] sm:$0xf] %vm953, %v912
  %978 = vst.msk [vmem:[%s5 + $0x60] sm:$0xf] %vm953, %v913
  %979 = vst.msk [vmem:[%s5 + $0x64] sm:$0xf] %vm953, %v914
  %980 = vst.msk [vmem:[%s5 + $0x68] sm:$0xf] %vm953, %v915
  %981 = vst.msk [vmem:[%s5 + $0x6c] sm:$0xf] %vm953, %v916
  %982 = vst.msk [vmem:[%s5 + $0x70] sm:$0xf] %vm953, %v917
  %983 = vst.msk [vmem:[%s5 + $0x74] sm:$0xf] %vm953, %v918
  %984 = vst.msk [vmem:[%s5 + $0x78] sm:$0xf] %vm953, %v919
  %985 = vst.msk [vmem:[%s5 + $0x7c] sm:$0xf] %vm953, %v920
  // Predicated region
  $region22: #{tpu_custom_call.1} parent=0 // pred_check
    _
  $region23: #{tpu_custom_call.1} parent=0 // pred_check_branch
    %987 = sbr.rel (0) target = $region25
  $region24: #{tpu_custom_call.1} parent=0 // pred_region
    _
  $region25: #{tpu_custom_call.1} parent=0 // pred_fallthru
    _
  // Predicated region
  $region26: #{tpu_custom_call.1} parent=0 // pred_check
    _
  $region27: #{tpu_custom_call.1} parent=0 // pred_check_branch
    %989 = sbr.rel (0) target = $region29
  $region28: #{tpu_custom_call.1} parent=0 // pred_region
    _
  $region29: #{tpu_custom_call.1} parent=0 // pred_fallthru
    _

</llo_original>
